<compile_context>
chip_gen: v7x
topology: tpu7x:2x2x1
jax: 0.10.0
libtpu: 0.0.40
codegen_flags: <defaults>
</compile_context>

<pallas_src>
import jax
import jax.numpy as jnp
from jax.experimental import pallas as pl
from jax.experimental.pallas import tpu as pltpu


_LANE = 512          # lane-dense slab width (multiple of 128)
_BLOCK_ROWS = 512    # default sublane rows per block -> 1 MiB f32 per input block


def _round_up(a, b):
    return -(-a // b) * b


def _make_kernel(n_valid, block_rows, lane, k_steps, need_mask):
    inv_n = 1.0 / float(n_valid)
    block_elems = block_rows * lane

    def kernel(x_ref, y_ref, o_ref, acc_ref):
        k = pl.program_id(1)

        # Zero the running sums at the start of this partition's reduction.
        @pl.when(k == 0)
        def _init():
            acc_ref[0] = jnp.float32(0.0)
            acc_ref[1] = jnp.float32(0.0)
            acc_ref[2] = jnp.float32(0.0)
            acc_ref[3] = jnp.float32(0.0)

        x = x_ref[...].astype(jnp.float32)
        y = y_ref[...].astype(jnp.float32)

        # Numerically stable BCE-with-logits (same formula PyTorch uses):
        #   l = max(x, 0) - x*y + log(1 + exp(-|x|))
        bce = jnp.maximum(x, 0.0) - x * y + jnp.log1p(jnp.exp(-jnp.abs(x)))
        # sigmoid(x) >= 0.5  <=>  x >= 0
        pos = (x >= 0.0).astype(jnp.float32)

        if need_mask:
            # Mask out padded tail elements from all four sums.
            p = pl.program_id(0)
            blk = p * k_steps + k
            base = blk * block_elems
            rows = jax.lax.broadcasted_iota(jnp.int32, (block_rows, lane), 0)
            cols = jax.lax.broadcasted_iota(jnp.int32, (block_rows, lane), 1)
            valid = (base + rows * lane + cols) < n_valid
            zero = jnp.zeros_like(bce)
            bce = jnp.where(valid, bce, zero)
            pos = jnp.where(valid, pos, zero)
            y = jnp.where(valid, y, zero)

        # Per-tile partial reductions (XLU) accumulated in SMEM scratch.
        acc_ref[0] += jnp.sum(bce)
        acc_ref[1] += jnp.sum(pos * y)
        acc_ref[2] += jnp.sum(pos)
        acc_ref[3] += jnp.sum(y)

        # Emit this partition's partial results on its final reduction step.
        @pl.when(k == k_steps - 1)
        def _fin():
            o_ref[0, 0] = acc_ref[0] * inv_n   # partial of mean BCE loss
            o_ref[0, 1] = acc_ref[1]           # TP partial
            o_ref[0, 2] = acc_ref[2]           # predicted positives partial
            o_ref[0, 3] = acc_ref[3]           # actual positives partial

    return kernel


def loss_forward(output, labels, *, block_rows=_BLOCK_ROWS):
    """Equivalent of Loss.forward(output, labels) -> [loss, TP, pos_prec, pos_rec]."""
    assert output.shape == labels.shape
    n = int(output.size)
    if n == 0:
        # Guard against div-by-zero; PyTorch's mean over an empty tensor is NaN.
        z = jnp.float32(0.0)
        return [jnp.float32(jnp.nan), z, z, z]

    x = output.reshape(-1)
    y = labels.reshape(-1)

    # Minimum sublane multiple for the native dtypes (f32:8, bf16:16, 1-byte:32).
    def _sub(dt):
        return {4: 8, 2: 16, 1: 32}.get(jnp.dtype(dt).itemsize, 8)

    sub = max(_sub(x.dtype), _sub(y.dtype))
    block_rows = _round_up(max(int(block_rows), sub), sub)

    rows = -(-n // _LANE)
    if rows >= 2 * block_rows:
        br, num_parts = block_rows, 2     # dual-TC partials on v7x; no-op on 1-TC chips
    elif rows > block_rows:
        br, num_parts = block_rows, 1
    else:
        br, num_parts = _round_up(max(rows, 1), sub), 1

    padded_rows = _round_up(rows, br * num_parts)
    k_steps = padded_rows // (br * num_parts)
    padded_n = padded_rows * _LANE
    need_mask = padded_n != n

    if need_mask:
        x = jnp.pad(x, (0, padded_n - n))
        y = jnp.pad(y, (0, padded_n - n))
    x2 = x.reshape(padded_rows, _LANE)     # native dtype, lane-dense slab
    y2 = y.reshape(padded_rows, _LANE)

    kernel = _make_kernel(n, br, _LANE, k_steps, need_mask)
    idx = lambda p, k: (p * k_steps + k, 0)

    in_bytes = (x2.size * x2.dtype.itemsize) + (y2.size * y2.dtype.itemsize)

    partials = pl.pallas_call(
        kernel,
        out_shape=jax.ShapeDtypeStruct((num_parts, 4), jnp.float32),
        grid_spec=pltpu.PrefetchScalarGridSpec(
            num_scalar_prefetch=0,
            grid=(num_parts, k_steps),
            in_specs=[
                pl.BlockSpec((br, _LANE), idx),
                pl.BlockSpec((br, _LANE), idx),
            ],
            out_specs=pl.BlockSpec((1, 4), lambda p, k: (p, 0),
                                   memory_space=pltpu.MemorySpace.SMEM),
            scratch_shapes=[pltpu.SMEM((4,), jnp.float32)],
        ),
        compiler_params=pltpu.CompilerParams(
            dimension_semantics=("parallel", "arbitrary")),
        cost_estimate=pl.CostEstimate(
            flops=8 * padded_n,
            transcendentals=2 * padded_n,
            bytes_accessed=in_bytes + num_parts * 16),
    )(x2, y2)

    res = jnp.sum(partials, axis=0)
    # TODO(synk): `.data[0]` Python-scalar extraction has no Pallas analogue;
    # 0-d jnp arrays are returned instead.
    return [res[0], res[1], res[2], res[3]]


def _reference(output, labels):
    x = output.astype(jnp.float32)
    y = labels.astype(jnp.float32)
    bce = jnp.mean(jnp.maximum(x, 0.0) - x * y + jnp.log1p(jnp.exp(-jnp.abs(x))))
    pos = (jax.nn.sigmoid(x) >= 0.5).astype(jnp.float32)
    return [bce, jnp.sum(pos * y), jnp.sum(pos), jnp.sum(y)]


if __name__ == "__main__":
    key = jax.random.PRNGKey(0)

    # (shape, logits dtype, block_rows override for the test)
    cases = [
        ((8, 130), jnp.float32, _BLOCK_ROWS),   # ragged last dim -> padding + mask path
        ((48, 512), jnp.float32, 16),           # P=2 partitions, k_steps=2 accumulation
        ((64, 96), jnp.bfloat16, _BLOCK_ROWS),  # native bf16 logits (no wrapper upcast)
    ]

    keys = jax.random.split(key, 2 * len(cases))
    for i, (shape, dt, brows) in enumerate(cases):
        logits = jax.random.normal(keys[2 * i], shape, dtype=jnp.float32).astype(dt)
        labels = jax.random.bernoulli(keys[2 * i + 1], p=0.3, shape=shape)
        labels = labels.astype(jnp.float32)

        got = loss_forward(logits, labels, block_rows=brows)
        got = [jax.block_until_ready(v) for v in got]

        want = _reference(logits, labels)
        for g, w in zip(got, want):
            assert jnp.allclose(g, w, rtol=1e-4, atol=1e-4), (shape, dt, g, w)

    print("KERNEL_OK")
</pallas_src>

<mosaic_0001>
module attributes {stable_mosaic.version = 11 : i64} {
  func.func @kernel(%arg0: i32, %arg1: i32, %arg2: memref<8x512xf32, #tpu.memory_space<vmem>>, %arg3: memref<8x512xf32, #tpu.memory_space<vmem>>, %arg4: memref<1x4xf32, #tpu.memory_space<smem>>, %arg5: memref<4xf32, #tpu.memory_space<smem>>) attributes {dimension_semantics = [#tpu.dimension_semantics<parallel>, #tpu.dimension_semantics<arbitrary>], iteration_bounds = array<i64: 1, 1>, scalar_prefetch = 0 : i64, scratch_operands = 1 : i64, tpu.core_type = #tpu.core_type<tc>, window_params = [{transform_indices = @transform_0, window_bounds = array<i64: 8, 512>}, {transform_indices = @transform_1, window_bounds = array<i64: 8, 512>}, {transform_indices = @transform_2, window_bounds = array<i64: 1, 4>}]} {
    %c0_i32 = arith.constant 0 : i32
    %0 = arith.cmpi eq, %arg1, %c0_i32 : i32
    %1 = arith.extui %0 : i1 to i32
    %c0_i32_0 = arith.constant 0 : i32
    %2 = arith.cmpi ne, %1, %c0_i32_0 : i32
    scf.if %2 {
      %cst_18 = arith.constant 0.000000e+00 : f32
      %c0_19 = arith.constant 0 : index
      %67 = memref.load %arg5[%c0_19] : memref<4xf32, #tpu.memory_space<smem>>
      memref.store %cst_18, %arg5[%c0_19] : memref<4xf32, #tpu.memory_space<smem>>
      %cst_20 = arith.constant 0.000000e+00 : f32
      %c1_21 = arith.constant 1 : index
      %68 = memref.load %arg5[%c1_21] : memref<4xf32, #tpu.memory_space<smem>>
      memref.store %cst_20, %arg5[%c1_21] : memref<4xf32, #tpu.memory_space<smem>>
      %cst_22 = arith.constant 0.000000e+00 : f32
      %c2_23 = arith.constant 2 : index
      %69 = memref.load %arg5[%c2_23] : memref<4xf32, #tpu.memory_space<smem>>
      memref.store %cst_22, %arg5[%c2_23] : memref<4xf32, #tpu.memory_space<smem>>
      %cst_24 = arith.constant 0.000000e+00 : f32
      %c3_25 = arith.constant 3 : index
      %70 = memref.load %arg5[%c3_25] : memref<4xf32, #tpu.memory_space<smem>>
      memref.store %cst_24, %arg5[%c3_25] : memref<4xf32, #tpu.memory_space<smem>>
    } else {
    }
    %c0 = arith.constant 0 : index
    %c0_1 = arith.constant 0 : index
    %3 = vector.load %arg2[%c0, %c0_1] : memref<8x512xf32, #tpu.memory_space<vmem>>, vector<8x512xf32>
    %c0_2 = arith.constant 0 : index
    %c0_3 = arith.constant 0 : index
    %4 = vector.load %arg3[%c0_2, %c0_3] : memref<8x512xf32, #tpu.memory_space<vmem>>, vector<8x512xf32>
    %cst = arith.constant 0.000000e+00 : f32
    %5 = vector.broadcast %cst : f32 to vector<8x512xf32>
    %6 = arith.maximumf %3, %5 : vector<8x512xf32>
    %7 = arith.mulf %3, %4 : vector<8x512xf32>
    %8 = arith.subf %6, %7 : vector<8x512xf32>
    %9 = math.absf %3 : vector<8x512xf32>
    %cst_4 = arith.constant 0.000000e+00 : f32
    %10 = vector.broadcast %cst_4 : f32 to vector<8x512xf32>
    %11 = arith.subf %10, %9 : vector<8x512xf32>
    %12 = math.exp %11 : vector<8x512xf32>
    %13 = math.log1p %12 : vector<8x512xf32>
    %14 = arith.addf %8, %13 : vector<8x512xf32>
    %cst_5 = arith.constant 0.000000e+00 : f32
    %15 = vector.broadcast %cst_5 : f32 to vector<8x512xf32>
    %16 = arith.cmpf oge, %3, %15 : vector<8x512xf32>
    %17 = arith.extui %16 : vector<8x512xi1> to vector<8x512xi32>
    %18 = arith.sitofp %17 : vector<8x512xi32> to vector<8x512xf32>
    %c1_i32 = arith.constant 1 : i32
    %19 = arith.muli %arg0, %c1_i32 : i32
    %20 = arith.addi %19, %arg1 : i32
    %c4096_i32 = arith.constant 4096 : i32
    %21 = arith.muli %20, %c4096_i32 : i32
    %22 = tpu.iota {dimensions = array<i32: 0>} : vector<8x512xi32>
    %23 = tpu.iota {dimensions = array<i32: 1>} : vector<8x512xi32>
    %c512_i32 = arith.constant 512 : i32
    %24 = vector.broadcast %c512_i32 : i32 to vector<8x512xi32>
    %25 = arith.muli %22, %24 : vector<8x512xi32>
    %26 = vector.broadcast %21 : i32 to vector<8x512xi32>
    %27 = arith.addi %26, %25 : vector<8x512xi32>
    %28 = arith.addi %27, %23 : vector<8x512xi32>
    %c1040_i32 = arith.constant 1040 : i32
    %29 = vector.broadcast %c1040_i32 : i32 to vector<8x512xi32>
    %30 = arith.cmpi slt, %28, %29 : vector<8x512xi32>
    %cst_6 = arith.constant 0.000000e+00 : f32
    %31 = vector.broadcast %cst_6 : f32 to vector<8x512xf32>
    %32 = arith.select %30, %14, %31 : vector<8x512xi1>, vector<8x512xf32>
    %33 = arith.select %30, %18, %31 : vector<8x512xi1>, vector<8x512xf32>
    %34 = arith.select %30, %4, %31 : vector<8x512xi1>, vector<8x512xf32>
    %c0_7 = arith.constant 0 : index
    %35 = memref.load %arg5[%c0_7] : memref<4xf32, #tpu.memory_space<smem>>
    %36 = vector.shape_cast %32 : vector<8x512xf32> to vector<1x8x512xf32>
    %cst_8 = arith.constant dense<0.000000e+00> : vector<1xf32>
    %37 = vector.multi_reduction <add>, %36, %cst_8 [1, 2] : vector<1x8x512xf32> to vector<1xf32>
    %38 = vector.shape_cast %37 : vector<1xf32> to vector<1x1x1xf32>
    %39 = vector.extract %38[0, 0, 0] : f32 from vector<1x1x1xf32>
    %40 = arith.addf %35, %39 : f32
    %c0_9 = arith.constant 0 : index
    %41 = memref.load %arg5[%c0_9] : memref<4xf32, #tpu.memory_space<smem>>
    memref.store %40, %arg5[%c0_9] : memref<4xf32, #tpu.memory_space<smem>>
    %c1 = arith.constant 1 : index
    %42 = memref.load %arg5[%c1] : memref<4xf32, #tpu.memory_space<smem>>
    %43 = arith.mulf %33, %34 : vector<8x512xf32>
    %44 = vector.shape_cast %43 : vector<8x512xf32> to vector<1x8x512xf32>
    %cst_10 = arith.constant dense<0.000000e+00> : vector<1xf32>
    %45 = vector.multi_reduction <add>, %44, %cst_10 [1, 2] : vector<1x8x512xf32> to vector<1xf32>
    %46 = vector.shape_cast %45 : vector<1xf32> to vector<1x1x1xf32>
    %47 = vector.extract %46[0, 0, 0] : f32 from vector<1x1x1xf32>
    %48 = arith.addf %42, %47 : f32
    %c1_11 = arith.constant 1 : index
    %49 = memref.load %arg5[%c1_11] : memref<4xf32, #tpu.memory_space<smem>>
    memref.store %48, %arg5[%c1_11] : memref<4xf32, #tpu.memory_space<smem>>
    %c2 = arith.constant 2 : index
    %50 = memref.load %arg5[%c2] : memref<4xf32, #tpu.memory_space<smem>>
    %51 = vector.shape_cast %33 : vector<8x512xf32> to vector<1x8x512xf32>
    %cst_12 = arith.constant dense<0.000000e+00> : vector<1xf32>
    %52 = vector.multi_reduction <add>, %51, %cst_12 [1, 2] : vector<1x8x512xf32> to vector<1xf32>
    %53 = vector.shape_cast %52 : vector<1xf32> to vector<1x1x1xf32>
    %54 = vector.extract %53[0, 0, 0] : f32 from vector<1x1x1xf32>
    %55 = arith.addf %50, %54 : f32
    %c2_13 = arith.constant 2 : index
    %56 = memref.load %arg5[%c2_13] : memref<4xf32, #tpu.memory_space<smem>>
    memref.store %55, %arg5[%c2_13] : memref<4xf32, #tpu.memory_space<smem>>
    %c3 = arith.constant 3 : index
    %57 = memref.load %arg5[%c3] : memref<4xf32, #tpu.memory_space<smem>>
    %58 = vector.shape_cast %34 : vector<8x512xf32> to vector<1x8x512xf32>
    %cst_14 = arith.constant dense<0.000000e+00> : vector<1xf32>
    %59 = vector.multi_reduction <add>, %58, %cst_14 [1, 2] : vector<1x8x512xf32> to vector<1xf32>
    %60 = vector.shape_cast %59 : vector<1xf32> to vector<1x1x1xf32>
    %61 = vector.extract %60[0, 0, 0] : f32 from vector<1x1x1xf32>
    %62 = arith.addf %57, %61 : f32
    %c3_15 = arith.constant 3 : index
    %63 = memref.load %arg5[%c3_15] : memref<4xf32, #tpu.memory_space<smem>>
    memref.store %62, %arg5[%c3_15] : memref<4xf32, #tpu.memory_space<smem>>
    %c0_i32_16 = arith.constant 0 : i32
    %64 = arith.cmpi eq, %arg1, %c0_i32_16 : i32
    %65 = arith.extui %64 : i1 to i32
    %c0_i32_17 = arith.constant 0 : i32
    %66 = arith.cmpi ne, %65, %c0_i32_17 : i32
    scf.if %66 {
      %c0_18 = arith.constant 0 : index
      %67 = memref.load %arg5[%c0_18] : memref<4xf32, #tpu.memory_space<smem>>
      %cst_19 = arith.constant 9.61538462E-4 : f32
      %68 = arith.mulf %67, %cst_19 : f32
      %c0_20 = arith.constant 0 : index
      %c0_21 = arith.constant 0 : index
      %69 = memref.load %arg4[%c0_20, %c0_21] : memref<1x4xf32, #tpu.memory_space<smem>>
      memref.store %68, %arg4[%c0_20, %c0_21] : memref<1x4xf32, #tpu.memory_space<smem>>
      %c1_22 = arith.constant 1 : index
      %70 = memref.load %arg5[%c1_22] : memref<4xf32, #tpu.memory_space<smem>>
      %c0_23 = arith.constant 0 : index
      %c1_24 = arith.constant 1 : index
      %71 = memref.load %arg4[%c0_23, %c1_24] : memref<1x4xf32, #tpu.memory_space<smem>>
      memref.store %70, %arg4[%c0_23, %c1_24] : memref<1x4xf32, #tpu.memory_space<smem>>
      %c2_25 = arith.constant 2 : index
      %72 = memref.load %arg5[%c2_25] : memref<4xf32, #tpu.memory_space<smem>>
      %c0_26 = arith.constant 0 : index
      %c2_27 = arith.constant 2 : index
      %73 = memref.load %arg4[%c0_26, %c2_27] : memref<1x4xf32, #tpu.memory_space<smem>>
      memref.store %72, %arg4[%c0_26, %c2_27] : memref<1x4xf32, #tpu.memory_space<smem>>
      %c3_28 = arith.constant 3 : index
      %74 = memref.load %arg5[%c3_28] : memref<4xf32, #tpu.memory_space<smem>>
      %c0_29 = arith.constant 0 : index
      %c3_30 = arith.constant 3 : index
      %75 = memref.load %arg4[%c0_29, %c3_30] : memref<1x4xf32, #tpu.memory_space<smem>>
      memref.store %74, %arg4[%c0_29, %c3_30] : memref<1x4xf32, #tpu.memory_space<smem>>
    } else {
    }
    return
  }
  func.func @transform_0(%arg0: i32, %arg1: i32) -> (i32, i32) {
    %c1_i32 = arith.constant 1 : i32
    %0 = arith.muli %arg0, %c1_i32 : i32
    %1 = arith.addi %0, %arg1 : i32
    %c0_i32 = arith.constant 0 : i32
    %c0_i32_0 = arith.constant 0 : i32
    return %1, %c0_i32 : i32, i32
  }
  func.func @transform_1(%arg0: i32, %arg1: i32) -> (i32, i32) {
    %c1_i32 = arith.constant 1 : i32
    %0 = arith.muli %arg0, %c1_i32 : i32
    %1 = arith.addi %0, %arg1 : i32
    %c0_i32 = arith.constant 0 : i32
    %c0_i32_0 = arith.constant 0 : i32
    return %1, %c0_i32 : i32, i32
  }
  func.func @transform_2(%arg0: i32, %arg1: i32) -> (i32, i32) {
    %c0_i32 = arith.constant 0 : i32
    %c0_i32_0 = arith.constant 0 : i32
    return %arg0, %c0_i32 : i32, i32
  }
}

</mosaic_0001>

<llo_original>
// kernel: tpu_custom_call.1
$region0: #{tpu_custom_call.1}
  #allocation0 [shape = 'u32[]', space=smem, size = 0x4, offset = 0x4, fixed_abs, tag = 'smem constant byte address 0x4 - core index']
  #allocation1 [shape = 'u32[144,128]{1,0:T(1,128)}', space=vmem, size = 0x12000, scoped, tag = 'internal scratch']
  #allocation2 [shape = 'f32[4]{0:T(128)}', space=smem, size = 0x200, scoped, tag = 'scratch operand']
  %s0 = inlined_call_operand.hbm [shape: f32[8,512], index: 0, kind: input, shape index: {}]
  %s1 = inlined_call_operand.hbm [shape: f32[8,512], index: 1, kind: input, shape index: {}]
  %s2 = inlined_call_operand.hbm [shape: f32[1,4], index: 2, kind: output, shape index: {}]
  %s3 = sld [smem:[#allocation0]]
  $region34: #{tpu_custom_call.1} parent=0
    _
  %s5 = ssub.s32 1, %s3
  %s6 = scalar_select 0, %s5, %s3
  $region1: #{tpu_custom_call.1} parent=0
    #allocation3 [shape = 'u8[16384]{0}', space=vmem, size = 0x4000, scoped, tag = 'input window, operand 0, single buffered']
    #allocation4 [shape = 's32[1]{0}', space=sflag, size = 0x4, scoped, tag = 'scoped memory for tpu_custom_call.1']
    #allocation5 [shape = 's32[1]{0}', space=sflag, size = 0x4, scoped, tag = 'scoped memory for tpu_custom_call.1']
    #allocation6 [shape = 'u8[16384]{0}', space=vmem, size = 0x4000, scoped, tag = 'input window, operand 1, single buffered']
    #allocation7 [shape = 's32[1]{0}', space=sflag, size = 0x4, scoped, tag = 'scoped memory for tpu_custom_call.1']
    #allocation8 [shape = 'u8[512]{0}', space=smem, size = 0x200, scoped, tag = 'output window, operand 0, single buffered']
    %7 = vsyncpa [#allocation4], 0
    %8 = vsyncpa [#allocation7], 0
    %9 = vsyncpa [#allocation5], 0
    // Predicated region
    $region2: #{tpu_custom_call.1} parent=1 // pred_check
      _
    $region3: #{tpu_custom_call.1} parent=1 // pred_check_branch
      %11 = sbr.rel (0) target = $region5
    $region4: #{tpu_custom_call.1} parent=1 // pred_region
      %s12 = sadd.s32 0, 0
      %s14 = ssub.s32 512, 512
      %15 = vsyncadd [#allocation4], %s14
      %s16 = smul.addr %s12, 4
      %s17 = smul.addr %s16, 128
      %s18 = scalar_lea.hbm %s0, %s17
      %s20 = sshll.u32 [#allocation3], 4
      %s21 = int_to_ptr.vmem [resolvable:$true] %s20
      %23 = dma.hbm_to_vmem [thread:$0]  %s18, 512, %s21, [#allocation4]
    $region5: #{tpu_custom_call.1} parent=1 // pred_fallthru
      _
    // Predicated region
    $region6: #{tpu_custom_call.1} parent=1 // pred_check
      _
    $region7: #{tpu_custom_call.1} parent=1 // pred_check_branch
      %25 = sbr.rel (0) target = $region9
    $region8: #{tpu_custom_call.1} parent=1 // pred_region
      %s26 = sadd.s32 0, 0
      %s28 = ssub.s32 512, 512
      %29 = vsyncadd [#allocation7], %s28
      %s30 = smul.addr %s26, 4
      %s31 = smul.addr %s30, 128
      %s32 = scalar_lea.hbm %s1, %s31
      %s34 = sshll.u32 [#allocation6], 4
      %s35 = int_to_ptr.vmem [resolvable:$true] %s34
      %37 = dma.hbm_to_vmem [thread:$0]  %s32, 512, %s35, [#allocation7]
    $region9: #{tpu_custom_call.1} parent=1 // pred_fallthru
      _
    // Predicated region
    $region10: #{tpu_custom_call.1} parent=1 // pred_check
      _
    $region11: #{tpu_custom_call.1} parent=1 // pred_check_branch
      %39 = sbr.rel (0) target = $region13
    $region12: #{tpu_custom_call.1} parent=1 // pred_region
      %40 = dma.done [#allocation4], 512
    $region13: #{tpu_custom_call.1} parent=1 // pred_fallthru
      _
    // Predicated region
    $region14: #{tpu_custom_call.1} parent=1 // pred_check
      _
    $region15: #{tpu_custom_call.1} parent=1 // pred_check_branch
      %42 = sbr.rel (0) target = $region17
    $region16: #{tpu_custom_call.1} parent=1 // pred_region
      %43 = dma.done [#allocation7], 512
    $region17: #{tpu_custom_call.1} parent=1 // pred_fallthru
      _
    %s44 = sadd.s32 0, 0
    %s45 = sadd.s32 0, 0
    %p46 = scmp.eq.s32.totalorder 0, 0
    // Predicated region
    $region18: #{tpu_custom_call.1} parent=1 // pred_check
      %p47 = pneg %p46
    $region19: #{tpu_custom_call.1} parent=1 // pred_check_branch
      %49 = sbr.rel (%p47) target = $region21
    $region20: #{tpu_custom_call.1} parent=1 // pred_region
      %s50 = scalar_lea.smem [#allocation2], 0
      %51 = sst [smem:[%s50]] 0.0
      %s52 = scalar_lea.smem [#allocation2], 1
      %53 = sst [smem:[%s52]] 0.0
      %s54 = scalar_lea.smem [#allocation2], 2
      %55 = sst [smem:[%s54]] 0.0
      %s56 = scalar_lea.smem [#allocation2], 3
      %57 = sst [smem:[%s56]] 0.0
    $region21: #{tpu_custom_call.1} parent=1 // pred_fallthru
      _
    %v58 = vld [vmem:[#allocation3] sm:$0xff]
    %v59 = vld [vmem:[#allocation3 + $0x8] sm:$0xff]
    %v60 = vld [vmem:[#allocation3 + $0x10] sm:$0xff]
    %v61 = vld [vmem:[#allocation3 + $0x18] sm:$0xff]
    %v62 = vld [vmem:[#allocation6] sm:$0xff]
    %v63 = vld [vmem:[#allocation6 + $0x8] sm:$0xff]
    %v64 = vld [vmem:[#allocation6 + $0x10] sm:$0xff]
    %v65 = vld [vmem:[#allocation6 + $0x18] sm:$0xff]
    %v66 = vmax.f32 %v58, 0.0
    %v67 = vmax.f32 %v59, 0.0
    %v68 = vmax.f32 %v60, 0.0
    %v69 = vmax.f32 %v61, 0.0
    %v70 = vmul.f32 %v58, %v62
    %v71 = vmul.f32 %v59, %v63
    %v72 = vmul.f32 %v60, %v64
    %v73 = vmul.f32 %v61, %v65
    %v74 = vsub.f32 %v66, %v70
    %v75 = vsub.f32 %v67, %v71
    %v76 = vsub.f32 %v68, %v72
    %v77 = vsub.f32 %v69, %v73
    %v78 = vand.u32 2147483647, %v58
    %v79 = vand.u32 2147483647, %v59
    %v80 = vand.u32 2147483647, %v60
    %v81 = vand.u32 2147483647, %v61
    %v82 = vsub.f32 0.0, %v78
    %v83 = vsub.f32 0.0, %v79
    %v84 = vsub.f32 0.0, %v80
    %v85 = vsub.f32 0.0, %v81
    %v86 = vmul.f32 %v82, 1.442695
    %v87 = vpow.pop %v86
    %v88 = vmul.f32 %v83, 1.442695
    %v89 = vpow.pop %v88
    %v90 = vmul.f32 %v84, 1.442695
    %v91 = vpow.pop %v90
    %v92 = vmul.f32 %v85, 1.442695
    %v93 = vpow.pop %v92
    %v94 = vadd.f32 %v87, 1.0
    %v95 = vlog2.pop %v94
    %v96 = vmul.f32 %v95, 0.6931472
    %v97 = vmul.f32 -0.5, %v87
    %v98 = vadd.f32 %v97, 1.0
    %v99 = vmul.f32 %v98, %v87
    %v100 = vand.u32 2147483647, %v87
    %vm101 = vcmp.lt.f32.partialorder %v100, 0.0004427343
    %v102 = vsel %vm101, %v99, %v96
    %v103 = vadd.f32 %v89, 1.0
    %v104 = vlog2.pop %v103
    %v105 = vmul.f32 %v104, 0.6931472
    %v106 = vmul.f32 -0.5, %v89
    %v107 = vadd.f32 %v106, 1.0
    %v108 = vmul.f32 %v107, %v89
    %v109 = vand.u32 2147483647, %v89
    %vm110 = vcmp.lt.f32.partialorder %v109, 0.0004427343
    %v111 = vsel %vm110, %v108, %v105
    %v112 = vadd.f32 %v91, 1.0
    %v113 = vlog2.pop %v112
    %v114 = vmul.f32 %v113, 0.6931472
    %v115 = vmul.f32 -0.5, %v91
    %v116 = vadd.f32 %v115, 1.0
    %v117 = vmul.f32 %v116, %v91
    %v118 = vand.u32 2147483647, %v91
    %vm119 = vcmp.lt.f32.partialorder %v118, 0.0004427343
    %v120 = vsel %vm119, %v117, %v114
    %v121 = vadd.f32 %v93, 1.0
    %v122 = vlog2.pop %v121
    %v123 = vmul.f32 %v122, 0.6931472
    %v124 = vmul.f32 -0.5, %v93
    %v125 = vadd.f32 %v124, 1.0
    %v126 = vmul.f32 %v125, %v93
    %v127 = vand.u32 2147483647, %v93
    %vm128 = vcmp.lt.f32.partialorder %v127, 0.0004427343
    %v129 = vsel %vm128, %v126, %v123
    %v130 = vadd.f32 %v74, %v102
    %v131 = vadd.f32 %v75, %v111
    %v132 = vadd.f32 %v76, %v120
    %v133 = vadd.f32 %v77, %v129
    %vm134 = vcmp.ge.f32.partialorder %v58, 0.0
    %vm135 = vcmp.ge.f32.partialorder %v59, 0.0
    %vm136 = vcmp.ge.f32.partialorder %v60, 0.0
    %vm137 = vcmp.ge.f32.partialorder %v61, 0.0
    %v138 = vsel %vm134, 1, 0
    %v139 = vsel %vm135, 1, 0
    %v140 = vsel %vm136, 1, 0
    %v141 = vsel %vm137, 1, 0
    %v142 = vcvt.s32.f32 %v138
    %v143 = vcvt.s32.f32 %v139
    %v144 = vcvt.s32.f32 %v140
    %v145 = vcvt.s32.f32 %v141
    %s146 = sadd.s32 0, 0
    %s147 = smul.u32 %s146, 4096
    %v148 = vlaneseq
    %v149 = vshrl.u32 %v148, 7
    %v150 = vlaneseq
    %v151 = vand.u32 %v150, 127
    %v152 = vadd.s32 %v151, 128
    %v153 = vadd.s32 %v151, 256
    %v154 = vadd.s32 %v151, 384
    %v155 = vmul.u32 %v149, 512
    %v156 = vstv %s147
    %v157 = vadd.s32 %v156, %v155
    %v158 = vadd.s32 %v157, %v151
    %v159 = vadd.s32 %v157, %v152
    %v160 = vadd.s32 %v157, %v153
    %v161 = vadd.s32 %v157, %v154
    %vm162 = vcmp.lt.s32.totalorder %v158, 1040
    %vm163 = vcmp.lt.s32.totalorder %v159, 1040
    %vm164 = vcmp.lt.s32.totalorder %v160, 1040
    %vm165 = vcmp.lt.s32.totalorder %v161, 1040
    %v166 = vsel %vm162, %v130, 0.0
    %v167 = vsel %vm163, %v131, 0.0
    %v168 = vsel %vm164, %v132, 0.0
    %v169 = vsel %vm165, %v133, 0.0
    %v170 = vsel %vm162, %v142, 0.0
    %v171 = vsel %vm163, %v143, 0.0
    %v172 = vsel %vm164, %v144, 0.0
    %v173 = vsel %vm165, %v145, 0.0
    %v174 = vsel %vm162, %v62, 0.0
    %v175 = vsel %vm163, %v63, 0.0
    %v176 = vsel %vm164, %v64, 0.0
    %v177 = vsel %vm165, %v65, 0.0
    %s178 = sld [smem:[#allocation2]]
    %v179 = vadd.f32 %v166, %v167
    %v180 = vadd.f32 %v179, %v168
    %v181 = vadd.f32 %v180, %v169
    %182 = vadd.xlane.f32.xlu0 %v181
    %v183 = vpop.xlane.xlu0 %182
    %v184 = vrot.slane %v183, 4
    %v185 = vadd.f32 %v183, %v184
    %v186 = vrot.slane %v185, 2
    %v187 = vadd.f32 %v185, %v186
    %v188 = vrot.slane %v187, 1
    %v189 = vadd.f32 %v187, %v188
    %s190 = vtos %v189
    %s191 = sadd.f32 %s178, %s190
    %s192 = scalar_lea.smem [#allocation2], 0
    %193 = sst [smem:[%s192]] %s191
    %s194 = sld [smem:[#allocation2 + $0x1]]
    %v195 = vmul.f32 %v170, %v174
    %v196 = vmul.f32 %v171, %v175
    %v197 = vmul.f32 %v172, %v176
    %v198 = vmul.f32 %v173, %v177
    %v199 = vadd.f32 %v195, %v196
    %v200 = vadd.f32 %v199, %v197
    %v201 = vadd.f32 %v200, %v198
    %202 = vadd.xlane.f32.xlu0 %v201
    %v203 = vpop.xlane.xlu0 %202
    %v204 = vrot.slane %v203, 4
    %v205 = vadd.f32 %v203, %v204
    %v206 = vrot.slane %v205, 2
    %v207 = vadd.f32 %v205, %v206
    %v208 = vrot.slane %v207, 1
    %v209 = vadd.f32 %v207, %v208
    %s210 = vtos %v209
    %s211 = sadd.f32 %s194, %s210
    %s212 = scalar_lea.smem [#allocation2], 1
    %213 = sst [smem:[%s212]] %s211
    %s214 = sld [smem:[#allocation2 + $0x2]]
    %v215 = vadd.f32 %v170, %v171
    %v216 = vadd.f32 %v215, %v172
    %v217 = vadd.f32 %v216, %v173
    %218 = vadd.xlane.f32.xlu0 %v217
    %v219 = vpop.xlane.xlu0 %218
    %v220 = vrot.slane %v219, 4
    %v221 = vadd.f32 %v219, %v220
    %v222 = vrot.slane %v221, 2
    %v223 = vadd.f32 %v221, %v222
    %v224 = vrot.slane %v223, 1
    %v225 = vadd.f32 %v223, %v224
    %s226 = vtos %v225
    %s227 = sadd.f32 %s214, %s226
    %s228 = scalar_lea.smem [#allocation2], 2
    %229 = sst [smem:[%s228]] %s227
    %s230 = sld [smem:[#allocation2 + $0x3]]
    %v231 = vadd.f32 %v174, %v175
    %v232 = vadd.f32 %v231, %v176
    %v233 = vadd.f32 %v232, %v177
    %234 = vadd.xlane.f32.xlu0 %v233
    %v235 = vpop.xlane.xlu0 %234
    %v236 = vrot.slane %v235, 4
    %v237 = vadd.f32 %v235, %v236
    %v238 = vrot.slane %v237, 2
    %v239 = vadd.f32 %v237, %v238
    %v240 = vrot.slane %v239, 1
    %v241 = vadd.f32 %v239, %v240
    %s242 = vtos %v241
    %s243 = sadd.f32 %s230, %s242
    %s244 = scalar_lea.smem [#allocation2], 3
    %245 = sst [smem:[%s244]] %s243
    // Predicated region
    $region22: #{tpu_custom_call.1} parent=1 // pred_check
      %p246 = pneg %p46
    $region23: #{tpu_custom_call.1} parent=1 // pred_check_branch
      %248 = sbr.rel (%p246) target = $region25
    $region24: #{tpu_custom_call.1} parent=1 // pred_region
      %s249 = sld [smem:[#allocation2]]
      %s250 = smul.f32 %s249, 0.00096153846
      %s251 = scalar_lea.smem [#allocation8], 0
      %252 = sst [smem:[%s251]] %s250
      %s253 = sld [smem:[#allocation2 + $0x1]]
      %s254 = scalar_lea.smem [#allocation8], 1
      %255 = sst [smem:[%s254]] %s253
      %s256 = sld [smem:[#allocation2 + $0x2]]
      %s257 = scalar_lea.smem [#allocation8], 2
      %258 = sst [smem:[%s257]] %s256
      %s259 = sld [smem:[#allocation2 + $0x3]]
      %s260 = scalar_lea.smem [#allocation8], 3
      %261 = sst [smem:[%s260]] %s259
    $region25: #{tpu_custom_call.1} parent=1 // pred_fallthru
      _
    // Predicated region
    $region26: #{tpu_custom_call.1} parent=1 // pred_check
      _
    $region27: #{tpu_custom_call.1} parent=1 // pred_check_branch
      %263 = sbr.rel (0) target = $region29
    $region28: #{tpu_custom_call.1} parent=1 // pred_region
      %s265 = ssub.s32 16, 16
      %266 = vsyncadd [#allocation5], %s265
      %269 = dma.smem_to_hbm [#allocation8], 16, %s2, [#allocation5]
    $region29: #{tpu_custom_call.1} parent=1 // pred_fallthru
      _
    // Predicated region
    $region30: #{tpu_custom_call.1} parent=1 // pred_check
      _
    $region31: #{tpu_custom_call.1} parent=1 // pred_check_branch
      %271 = sbr.rel (0) target = $region33
    $region32: #{tpu_custom_call.1} parent=1 // pred_region
      %272 = dma.done [#allocation5], 16
    $region33: #{tpu_custom_call.1} parent=1 // pred_fallthru
      _
    %273 = sfence
    %274 = vsyncpa [#allocation4], 1
    %275 = vsyncpa [#allocation7], 1
    %276 = vsyncpa [#allocation5], 1

</llo_original>
